<compile_context>
chip_gen: v5e
topology: v5e:2x2
jax: 0.10.0
libtpu: 0.0.40
codegen_flags: <defaults>
</compile_context>

<pallas_src>
import functools

import jax
import jax.numpy as jnp
from jax.experimental import pallas as pl
from jax.experimental.pallas import tpu as pltpu

KERNELS = (1, 2, 3, 4)
CHANNELS = (10, 20, 30, 40)   # total = 100
C_TOTAL = sum(CHANNELS)       # 100
C_PAD = 128                   # lane-padded channel width


def _round_up(x, m):
    return (x + m - 1) // m * m


def _char_cnn_kernel(W, Tm, ce_ref, cw_ref, cb_ref, mask_ref, out_ref):
    """One row-tile (Tm rows of the flattened B*L axis) per grid step.

    ce_ref   : (W+3, Tm, Dc) bf16  char embeddings, width-major (3 zero-padded width rows)
    cw_ref   : (4, Dc, 128)  bf16  fused conv weights (shift-major, channel-lane fused)
    cb_ref   : (1, 128)      f32   fused conv bias (padded lanes = 0)
    mask_ref : (3, 128)      f32   per-lane validity for the last 3 width positions
    out_ref  : (Tm, 128)     f32   max-pooled char features (lanes >= 100 are zero)
    """
    Dc = ce_ref.shape[-1]
    n_shift = cw_ref.shape[0]               # 4 = max kernel width

    # Fused conv: sum of shifted matmuls over the char dim, f32 accumulation on the MXU.
    conv = jnp.dot(ce_ref[0:W, :, :].reshape(W * Tm, Dc), cw_ref[0, :, :],
                   preferred_element_type=jnp.float32)
    for j in range(1, n_shift):             # static loop, 3 iterations
        conv = conv + jnp.dot(ce_ref[j:j + W, :, :].reshape(W * Tm, Dc),
                              cw_ref[j, :, :],
                              preferred_element_type=jnp.float32)
    conv = jnp.maximum(conv + cb_ref[...], 0.0)          # bias + ReLU, (W*Tm, 128)

    # Max over width: rows are width-major blocks of Tm rows each.
    # Only the last (n_shift - 1) width positions can be invalid for some branches.
    first_masked = W - (n_shift - 1)
    pooled = conv[0:Tm, :]
    for w in range(1, W):                   # static loop
        blk = conv[w * Tm:(w + 1) * Tm, :]
        if w >= first_masked:
            m = w - first_masked
            blk = blk * mask_ref[m:m + 1, :]             # exact: post-ReLU values >= 0
        pooled = jnp.maximum(pooled, blk)

    out_ref[...] = pooled.astype(out_ref.dtype)


def character_embedding_forward(char_ids, params, *, tm_target=256):
    """char_ids: (B, L, W) int32 -> (B, L, 100) f32 (eval-mode CharacterEmbedding)."""
    char_table = params["char_table"]                    # (num_chars, Dc), row 0 is zero
    Dc = char_table.shape[1]
    B, L, W = char_ids.shape
    n_shift = max(KERNELS)                               # 4
    KP = n_shift - 1                                     # width zero-padding
    assert W >= n_shift, "word length must be >= max conv kernel width"

    # Flatten (B, L) -> M rows, pad to a tile multiple (multiple of 16 for bf16 tiling).
    M = B * L
    Tm = min(_round_up(tm_target, 16), _round_up(M, 16))
    Mpad = _round_up(M, Tm)

    ids = char_ids.reshape(M, W).astype(jnp.int32)
    if Mpad > M:
        ids = jnp.pad(ids, ((0, Mpad - M), (0, 0)))      # pad rows with char id 0
    # Width-major layout change on the cheap int ids, + KP padded width rows.
    ids_wm = jnp.pad(ids.T, ((0, KP), (0, 0)))           # (W+KP, Mpad)

    # Gather directly in width-major order, in bf16 (halves the dominant HBM traffic).
    ce = jnp.take(char_table.astype(jnp.bfloat16), ids_wm, axis=0)   # (W+KP, Mpad, Dc)

    # Fuse the four conv branches along the channel/lane axis.
    cw = jnp.zeros((n_shift, Dc, C_PAD), jnp.float32)
    cb = jnp.zeros((1, C_PAD), jnp.float32)
    lane_k = jnp.zeros((C_PAD,), jnp.int32)
    off = 0
    for k, c in zip(KERNELS, CHANNELS):
        cw = cw.at[:k, :, off:off + c].set(params[f"conv_w{k}"])
        cb = cb.at[0, off:off + c].set(params[f"conv_b{k}"])
        lane_k = lane_k.at[off:off + c].set(k)
        off += c
    cw = cw.astype(jnp.bfloat16)

    # Per-lane pooling validity for width positions W-3, W-2, W-1:
    # position w is valid for a branch with kernel k iff w <= W - k.
    w_pos = (W - KP) + jnp.arange(KP)[:, None]                       # (KP, 1)
    pool_mask = ((w_pos <= W - lane_k[None, :]) &
                 (lane_k[None, :] > 0)).astype(jnp.float32)          # (KP, 128)

    kernel = functools.partial(_char_cnn_kernel, W, Tm)

    out = pl.pallas_call(
        kernel,
        out_shape=jax.ShapeDtypeStruct((Mpad, C_PAD), jnp.float32),
        grid=(Mpad // Tm,),
        in_specs=[
            pl.BlockSpec((W + KP, Tm, Dc), lambda i: (0, i, 0)),
            pl.BlockSpec((n_shift, Dc, C_PAD), lambda i: (0, 0, 0)),
            pl.BlockSpec((1, C_PAD), lambda i: (0, 0)),
            pl.BlockSpec((KP, C_PAD), lambda i: (0, 0)),
        ],
        out_specs=pl.BlockSpec((Tm, C_PAD), lambda i: (i, 0)),
        compiler_params=pltpu.CompilerParams(
            dimension_semantics=("parallel",),
            vmem_limit_bytes=32 * 1024 * 1024,
        ),
    )(ce, cw, cb, pool_mask)

    return out[:M, :C_TOTAL].reshape(B, L, C_TOTAL)


def reference_forward(char_ids, params):
    """Pure-JAX f32 reference mirroring the PyTorch module (eval mode)."""
    ce = params["char_table"][char_ids]                  # (B, L, W, Dc)
    W = ce.shape[2]
    outs = []
    for k in KERNELS:
        wk = params[f"conv_w{k}"]                        # (k, Dc, Ck)
        bk = params[f"conv_b{k}"]                        # (Ck,)
        wout = W - k + 1
        conv = sum(jnp.einsum("blwd,dc->blwc", ce[:, :, j:j + wout, :], wk[j])
                   for j in range(k))
        conv = jax.nn.relu(conv + bk)
        outs.append(jnp.max(conv, axis=2))               # (B, L, Ck)
    return jnp.concatenate(outs, axis=-1)                # (B, L, 100)


def init_params(key, num_chars, char_dim):
    keys = jax.random.split(key, 1 + 2 * len(KERNELS))
    it = iter(keys)
    p = {}
    ct = 0.1 * jax.random.normal(next(it), (num_chars, char_dim), jnp.float32)
    p["char_table"] = ct.at[0].set(0.0)                  # padding_idx=0
    for k, c in zip(KERNELS, CHANNELS):
        p[f"conv_w{k}"] = 0.1 * jax.random.normal(next(it), (k, char_dim, c), jnp.float32)
        p[f"conv_b{k}"] = 0.1 * jax.random.normal(next(it), (c,), jnp.float32)
    return p


if __name__ == "__main__":
    B, L, W = 2, 8, 16                   # batch, seq len, max chars per word
    num_chars, char_dim = 50, 16

    key = jax.random.PRNGKey(0)
    k_params, k_ids = jax.random.split(key, 2)

    params = init_params(k_params, num_chars, char_dim)
    char_ids = jax.random.randint(k_ids, (B, L, W), 0, num_chars, dtype=jnp.int32)

    out = character_embedding_forward(char_ids, params)
    out = jax.block_until_ready(out)

    ref = jax.block_until_ready(reference_forward(char_ids, params))
    assert out.shape == (B, L, C_TOTAL), out.shape
    max_err = float(jnp.max(jnp.abs(out - ref)))
    # bf16 inputs + f32 accumulation: small numeric drift vs the f32 reference is expected.
    assert max_err < 2e-2, f"mismatch vs reference: {max_err}"

    print("KERNEL_OK")
</pallas_src>

<mosaic_0001>
module attributes {stable_mosaic.version = 11 : i64} {
  func.func @_char_cnn_kernel(%arg0: i32, %arg1: memref<19x16x16xbf16, #tpu.memory_space<vmem>>, %arg2: memref<4x16x128xbf16, #tpu.memory_space<vmem>>, %arg3: memref<1x128xf32, #tpu.memory_space<vmem>>, %arg4: memref<3x128xf32, #tpu.memory_space<vmem>>, %arg5: memref<16x128xf32, #tpu.memory_space<vmem>>) attributes {dimension_semantics = [#tpu.dimension_semantics<parallel>], iteration_bounds = array<i64: 1>, scalar_prefetch = 0 : i64, scratch_operands = 0 : i64, tpu.core_type = #tpu.core_type<tc>, window_params = [{transform_indices = @transform_0, window_bounds = array<i64: 19, 16, 16>}, {pipeline_mode = #tpu.pipeline_mode<synchronous>, transform_indices = @transform_1, window_bounds = array<i64: 4, 16, 128>}, {pipeline_mode = #tpu.pipeline_mode<synchronous>, transform_indices = @transform_2, window_bounds = array<i64: 1, 128>}, {pipeline_mode = #tpu.pipeline_mode<synchronous>, transform_indices = @transform_3, window_bounds = array<i64: 3, 128>}, {transform_indices = @transform_4, window_bounds = array<i64: 16, 128>}]} {
    %c0 = arith.constant 0 : index
    %c0_0 = arith.constant 0 : index
    %c0_1 = arith.constant 0 : index
    %0 = vector.load %arg1[%c0, %c0_0, %c0_1] : memref<19x16x16xbf16, #tpu.memory_space<vmem>>, vector<16x16x16xbf16>
    %1 = vector.shape_cast %0 : vector<16x16x16xbf16> to vector<256x16xbf16>
    %c0_2 = arith.constant 0 : index
    %c0_3 = arith.constant 0 : index
    %c0_4 = arith.constant 0 : index
    %2 = vector.load %arg2[%c0_2, %c0_3, %c0_4] : memref<4x16x128xbf16, #tpu.memory_space<vmem>>, vector<1x16x128xbf16>
    %3 = vector.shape_cast %2 : vector<1x16x128xbf16> to vector<16x128xbf16>
    %cst = arith.constant dense<0.000000e+00> : vector<256x128xf32>
    %4 = tpu.matmul %1, %3, %cst {dimension_numbers = #tpu.dot_dimension_numbers<[1], [0], [0], [1], [0, 0, 1, 1], [], []>} : vector<256x16xbf16>, vector<16x128xbf16>, vector<256x128xf32> -> vector<256x128xf32>
    %c1 = arith.constant 1 : index
    %c0_5 = arith.constant 0 : index
    %c0_6 = arith.constant 0 : index
    %5 = vector.load %arg1[%c1, %c0_5, %c0_6] : memref<19x16x16xbf16, #tpu.memory_space<vmem>>, vector<16x16x16xbf16>
    %6 = vector.shape_cast %5 : vector<16x16x16xbf16> to vector<256x16xbf16>
    %c1_7 = arith.constant 1 : index
    %c0_8 = arith.constant 0 : index
    %c0_9 = arith.constant 0 : index
    %7 = vector.load %arg2[%c1_7, %c0_8, %c0_9] : memref<4x16x128xbf16, #tpu.memory_space<vmem>>, vector<1x16x128xbf16>
    %8 = vector.shape_cast %7 : vector<1x16x128xbf16> to vector<16x128xbf16>
    %cst_10 = arith.constant dense<0.000000e+00> : vector<256x128xf32>
    %9 = tpu.matmul %6, %8, %cst_10 {dimension_numbers = #tpu.dot_dimension_numbers<[1], [0], [0], [1], [0, 0, 1, 1], [], []>} : vector<256x16xbf16>, vector<16x128xbf16>, vector<256x128xf32> -> vector<256x128xf32>
    %10 = arith.addf %4, %9 : vector<256x128xf32>
    %c2 = arith.constant 2 : index
    %c0_11 = arith.constant 0 : index
    %c0_12 = arith.constant 0 : index
    %11 = vector.load %arg1[%c2, %c0_11, %c0_12] : memref<19x16x16xbf16, #tpu.memory_space<vmem>>, vector<16x16x16xbf16>
    %12 = vector.shape_cast %11 : vector<16x16x16xbf16> to vector<256x16xbf16>
    %c2_13 = arith.constant 2 : index
    %c0_14 = arith.constant 0 : index
    %c0_15 = arith.constant 0 : index
    %13 = vector.load %arg2[%c2_13, %c0_14, %c0_15] : memref<4x16x128xbf16, #tpu.memory_space<vmem>>, vector<1x16x128xbf16>
    %14 = vector.shape_cast %13 : vector<1x16x128xbf16> to vector<16x128xbf16>
    %cst_16 = arith.constant dense<0.000000e+00> : vector<256x128xf32>
    %15 = tpu.matmul %12, %14, %cst_16 {dimension_numbers = #tpu.dot_dimension_numbers<[1], [0], [0], [1], [0, 0, 1, 1], [], []>} : vector<256x16xbf16>, vector<16x128xbf16>, vector<256x128xf32> -> vector<256x128xf32>
    %16 = arith.addf %10, %15 : vector<256x128xf32>
    %c3 = arith.constant 3 : index
    %c0_17 = arith.constant 0 : index
    %c0_18 = arith.constant 0 : index
    %17 = vector.load %arg1[%c3, %c0_17, %c0_18] : memref<19x16x16xbf16, #tpu.memory_space<vmem>>, vector<16x16x16xbf16>
    %18 = vector.shape_cast %17 : vector<16x16x16xbf16> to vector<256x16xbf16>
    %c3_19 = arith.constant 3 : index
    %c0_20 = arith.constant 0 : index
    %c0_21 = arith.constant 0 : index
    %19 = vector.load %arg2[%c3_19, %c0_20, %c0_21] : memref<4x16x128xbf16, #tpu.memory_space<vmem>>, vector<1x16x128xbf16>
    %20 = vector.shape_cast %19 : vector<1x16x128xbf16> to vector<16x128xbf16>
    %cst_22 = arith.constant dense<0.000000e+00> : vector<256x128xf32>
    %21 = tpu.matmul %18, %20, %cst_22 {dimension_numbers = #tpu.dot_dimension_numbers<[1], [0], [0], [1], [0, 0, 1, 1], [], []>} : vector<256x16xbf16>, vector<16x128xbf16>, vector<256x128xf32> -> vector<256x128xf32>
    %22 = arith.addf %16, %21 : vector<256x128xf32>
    %c0_23 = arith.constant 0 : index
    %c0_24 = arith.constant 0 : index
    %23 = vector.load %arg3[%c0_23, %c0_24] : memref<1x128xf32, #tpu.memory_space<vmem>>, vector<1x128xf32>
    %24 = vector.broadcast %23 : vector<1x128xf32> to vector<256x128xf32>
    %25 = arith.addf %22, %24 : vector<256x128xf32>
    %cst_25 = arith.constant 0.000000e+00 : f32
    %26 = vector.broadcast %cst_25 : f32 to vector<256x128xf32>
    %27 = arith.maximumf %25, %26 : vector<256x128xf32>
    %28 = vector.extract_strided_slice %27 {offsets = [0, 0], sizes = [16, 128], strides = [1, 1]} : vector<256x128xf32> to vector<16x128xf32>
    %29 = vector.extract_strided_slice %27 {offsets = [16, 0], sizes = [16, 128], strides = [1, 1]} : vector<256x128xf32> to vector<16x128xf32>
    %30 = arith.maximumf %28, %29 : vector<16x128xf32>
    %31 = vector.extract_strided_slice %27 {offsets = [32, 0], sizes = [16, 128], strides = [1, 1]} : vector<256x128xf32> to vector<16x128xf32>
    %32 = arith.maximumf %30, %31 : vector<16x128xf32>
    %33 = vector.extract_strided_slice %27 {offsets = [48, 0], sizes = [16, 128], strides = [1, 1]} : vector<256x128xf32> to vector<16x128xf32>
    %34 = arith.maximumf %32, %33 : vector<16x128xf32>
    %35 = vector.extract_strided_slice %27 {offsets = [64, 0], sizes = [16, 128], strides = [1, 1]} : vector<256x128xf32> to vector<16x128xf32>
    %36 = arith.maximumf %34, %35 : vector<16x128xf32>
    %37 = vector.extract_strided_slice %27 {offsets = [80, 0], sizes = [16, 128], strides = [1, 1]} : vector<256x128xf32> to vector<16x128xf32>
    %38 = arith.maximumf %36, %37 : vector<16x128xf32>
    %39 = vector.extract_strided_slice %27 {offsets = [96, 0], sizes = [16, 128], strides = [1, 1]} : vector<256x128xf32> to vector<16x128xf32>
    %40 = arith.maximumf %38, %39 : vector<16x128xf32>
    %41 = vector.extract_strided_slice %27 {offsets = [112, 0], sizes = [16, 128], strides = [1, 1]} : vector<256x128xf32> to vector<16x128xf32>
    %42 = arith.maximumf %40, %41 : vector<16x128xf32>
    %43 = vector.extract_strided_slice %27 {offsets = [128, 0], sizes = [16, 128], strides = [1, 1]} : vector<256x128xf32> to vector<16x128xf32>
    %44 = arith.maximumf %42, %43 : vector<16x128xf32>
    %45 = vector.extract_strided_slice %27 {offsets = [144, 0], sizes = [16, 128], strides = [1, 1]} : vector<256x128xf32> to vector<16x128xf32>
    %46 = arith.maximumf %44, %45 : vector<16x128xf32>
    %47 = vector.extract_strided_slice %27 {offsets = [160, 0], sizes = [16, 128], strides = [1, 1]} : vector<256x128xf32> to vector<16x128xf32>
    %48 = arith.maximumf %46, %47 : vector<16x128xf32>
    %49 = vector.extract_strided_slice %27 {offsets = [176, 0], sizes = [16, 128], strides = [1, 1]} : vector<256x128xf32> to vector<16x128xf32>
    %50 = arith.maximumf %48, %49 : vector<16x128xf32>
    %51 = vector.extract_strided_slice %27 {offsets = [192, 0], sizes = [16, 128], strides = [1, 1]} : vector<256x128xf32> to vector<16x128xf32>
    %52 = arith.maximumf %50, %51 : vector<16x128xf32>
    %53 = vector.extract_strided_slice %27 {offsets = [208, 0], sizes = [16, 128], strides = [1, 1]} : vector<256x128xf32> to vector<16x128xf32>
    %c0_26 = arith.constant 0 : index
    %c0_27 = arith.constant 0 : index
    %54 = vector.load %arg4[%c0_26, %c0_27] : memref<3x128xf32, #tpu.memory_space<vmem>>, vector<1x128xf32>
    %55 = vector.broadcast %54 : vector<1x128xf32> to vector<16x128xf32>
    %56 = arith.mulf %53, %55 : vector<16x128xf32>
    %57 = arith.maximumf %52, %56 : vector<16x128xf32>
    %58 = vector.extract_strided_slice %27 {offsets = [224, 0], sizes = [16, 128], strides = [1, 1]} : vector<256x128xf32> to vector<16x128xf32>
    %c1_28 = arith.constant 1 : index
    %c0_29 = arith.constant 0 : index
    %59 = vector.load %arg4[%c1_28, %c0_29] : memref<3x128xf32, #tpu.memory_space<vmem>>, vector<1x128xf32>
    %60 = vector.broadcast %59 : vector<1x128xf32> to vector<16x128xf32>
    %61 = arith.mulf %58, %60 : vector<16x128xf32>
    %62 = arith.maximumf %57, %61 : vector<16x128xf32>
    %63 = vector.extract_strided_slice %27 {offsets = [240, 0], sizes = [16, 128], strides = [1, 1]} : vector<256x128xf32> to vector<16x128xf32>
    %c2_30 = arith.constant 2 : index
    %c0_31 = arith.constant 0 : index
    %64 = vector.load %arg4[%c2_30, %c0_31] : memref<3x128xf32, #tpu.memory_space<vmem>>, vector<1x128xf32>
    %65 = vector.broadcast %64 : vector<1x128xf32> to vector<16x128xf32>
    %66 = arith.mulf %63, %65 : vector<16x128xf32>
    %67 = arith.maximumf %62, %66 : vector<16x128xf32>
    %c0_32 = arith.constant 0 : index
    %c0_33 = arith.constant 0 : index
    %68 = vector.load %arg5[%c0_32, %c0_33] : memref<16x128xf32, #tpu.memory_space<vmem>>, vector<16x128xf32>
    tpu.vector_store %arg5[%c0_32, %c0_33], %67 {strides = array<i32>} : memref<16x128xf32, #tpu.memory_space<vmem>>, vector<16x128xf32>,
    return
  }
  func.func @transform_0(%arg0: i32) -> (i32, i32, i32) {
    %c0_i32 = arith.constant 0 : i32
    %c0_i32_0 = arith.constant 0 : i32
    %c0_i32_1 = arith.constant 0 : i32
    return %c0_i32, %arg0, %c0_i32_0 : i32, i32, i32
  }
  func.func @transform_1(%arg0: i32) -> (i32, i32, i32) {
    %c0_i32 = arith.constant 0 : i32
    %c0_i32_0 = arith.constant 0 : i32
    %c0_i32_1 = arith.constant 0 : i32
    %c0_i32_2 = arith.constant 0 : i32
    return %c0_i32, %c0_i32_0, %c0_i32_1 : i32, i32, i32
  }
  func.func @transform_2(%arg0: i32) -> (i32, i32) {
    %c0_i32 = arith.constant 0 : i32
    %c0_i32_0 = arith.constant 0 : i32
    %c0_i32_1 = arith.constant 0 : i32
    return %c0_i32, %c0_i32_0 : i32, i32
  }
  func.func @transform_3(%arg0: i32) -> (i32, i32) {
    %c0_i32 = arith.constant 0 : i32
    %c0_i32_0 = arith.constant 0 : i32
    %c0_i32_1 = arith.constant 0 : i32
    return %c0_i32, %c0_i32_0 : i32, i32
  }
  func.func @transform_4(%arg0: i32) -> (i32, i32) {
    %c0_i32 = arith.constant 0 : i32
    %c0_i32_0 = arith.constant 0 : i32
    return %arg0, %c0_i32 : i32, i32
  }
}

</mosaic_0001>

<llo_original>
// kernel: tpu_custom_call.1
$region0: #{tpu_custom_call.1}
  #allocation0 [shape = 'u32[]', space=smem, size = 0x4, offset = 0x4, fixed_abs, tag = 'smem constant byte address 0x4 - core index']
  #allocation1 [shape = 'u32[72,128]{1,0:T(1,128)}', space=vmem, size = 0x9000, scoped, tag = 'internal scratch']
  %s0 = inlined_call_operand.vmem [shape: bf16[19,16,16], index: 0, kind: input, shape index: {}]
  %s1 = inlined_call_operand.vmem [shape: bf16[4,16,128], index: 1, kind: input, shape index: {}]
  %s2 = inlined_call_operand.vmem [shape: f32[1,128], index: 2, kind: input, shape index: {}]
  %s3 = inlined_call_operand.vmem [shape: f32[3,128], index: 3, kind: input, shape index: {}]
  %s4 = inlined_call_operand.hbm [shape: f32[16,128], index: 4, kind: output, shape index: {}]
  %s5 = sld [smem:[#allocation0]]
  $region26: #{tpu_custom_call.1} parent=0
    _
  %s7 = ssub.s32 1, %s5
  %s8 = scalar_select 0, %s7, %s5
  $region1: #{tpu_custom_call.1} parent=0
    #allocation2 [shape = 'u8[8192]{0}', space=vmem, size = 0x2000, scoped, tag = 'output window, operand 0, single buffered']
    #allocation3 [shape = 's32[1]{0}', space=sflag, size = 0x4, scoped, tag = 'scoped memory for tpu_custom_call.1']
    %9 = vsyncpa [#allocation3], 0
    // Predicated region
    $region2: #{tpu_custom_call.1} parent=1 // pred_check
      _
    $region3: #{tpu_custom_call.1} parent=1 // pred_check_branch
      %11 = sbr.rel (0) target = $region5
    $region4: #{tpu_custom_call.1} parent=1 // pred_region
      _
    $region5: #{tpu_custom_call.1} parent=1 // pred_fallthru
      _
    // Predicated region
    $region6: #{tpu_custom_call.1} parent=1 // pred_check
      _
    $region7: #{tpu_custom_call.1} parent=1 // pred_check_branch
      %13 = sbr.rel (0) target = $region9
    $region8: #{tpu_custom_call.1} parent=1 // pred_region
      _
    $region9: #{tpu_custom_call.1} parent=1 // pred_fallthru
      _
    // Predicated region
    $region10: #{tpu_custom_call.1} parent=1 // pred_check
      _
    $region11: #{tpu_custom_call.1} parent=1 // pred_check_branch
      %15 = sbr.rel (0) target = $region13
    $region12: #{tpu_custom_call.1} parent=1 // pred_region
      _
    $region13: #{tpu_custom_call.1} parent=1 // pred_fallthru
      _
    // Predicated region
    $region14: #{tpu_custom_call.1} parent=1 // pred_check
      _
    $region15: #{tpu_custom_call.1} parent=1 // pred_check_branch
      %17 = sbr.rel (0) target = $region17
    $region16: #{tpu_custom_call.1} parent=1 // pred_region
      _
    $region17: #{tpu_custom_call.1} parent=1 // pred_fallthru
      _
    %v19 = vld [vmem:[%s0] sm:$0xf]
    %v20 = vld [vmem:[%s0 + $0x4] sm:$0xf]
    %v21 = vld [vmem:[%s0 + $0x8] sm:$0xf]
    %v22 = vld [vmem:[%s0 + $0xc] sm:$0xf]
    %v23 = vld [vmem:[%s0 + $0x10] sm:$0xf]
    %v24 = vld [vmem:[%s0 + $0x14] sm:$0xf]
    %v25 = vld [vmem:[%s0 + $0x18] sm:$0xf]
    %v26 = vld [vmem:[%s0 + $0x1c] sm:$0xf]
    %v27 = vld [vmem:[%s0 + $0x20] sm:$0xf]
    %v28 = vld [vmem:[%s0 + $0x24] sm:$0xf]
    %v29 = vld [vmem:[%s0 + $0x28] sm:$0xf]
    %v30 = vld [vmem:[%s0 + $0x2c] sm:$0xf]
    %v31 = vld [vmem:[%s0 + $0x30] sm:$0xf]
    %v32 = vld [vmem:[%s0 + $0x34] sm:$0xf]
    %v33 = vld [vmem:[%s0 + $0x38] sm:$0xf]
    %v34 = vld [vmem:[%s0 + $0x3c] sm:$0xf]
    %v35 = vld [vmem:[%s0 + $0x40] sm:$0xf]
    %v36 = vld [vmem:[%s0 + $0x44] sm:$0xf]
    %v37 = vld [vmem:[%s0 + $0x48] sm:$0xf]
    %v38 = vld [vmem:[%s0 + $0x4c] sm:$0xf]
    %v39 = vld [vmem:[%s0 + $0x50] sm:$0xf]
    %v40 = vld [vmem:[%s0 + $0x54] sm:$0xf]
    %v41 = vld [vmem:[%s0 + $0x58] sm:$0xf]
    %v42 = vld [vmem:[%s0 + $0x5c] sm:$0xf]
    %v43 = vld [vmem:[%s0 + $0x60] sm:$0xf]
    %v44 = vld [vmem:[%s0 + $0x64] sm:$0xf]
    %v45 = vld [vmem:[%s0 + $0x68] sm:$0xf]
    %v46 = vld [vmem:[%s0 + $0x6c] sm:$0xf]
    %v47 = vld [vmem:[%s0 + $0x70] sm:$0xf]
    %v48 = vld [vmem:[%s0 + $0x74] sm:$0xf]
    %v49 = vld [vmem:[%s0 + $0x78] sm:$0xf]
    %v50 = vld [vmem:[%s0 + $0x7c] sm:$0xf]
    %v51 = vld [vmem:[%s1] sm:$0xf]
    %v52 = vld [vmem:[%s1 + $0x4] sm:$0xf]
    %s53 = scalar_lea.vmem %s0, 8
    %v54 = vld [vmem:[%s53] sm:$0xf]
    %v55 = vld [vmem:[%s53 + $0x4] sm:$0xf]
    %v56 = vld [vmem:[%s53 + $0x8] sm:$0xf]
    %v57 = vld [vmem:[%s53 + $0xc] sm:$0xf]
    %v58 = vld [vmem:[%s53 + $0x10] sm:$0xf]
    %v59 = vld [vmem:[%s53 + $0x14] sm:$0xf]
    %v60 = vld [vmem:[%s53 + $0x18] sm:$0xf]
    %v61 = vld [vmem:[%s53 + $0x1c] sm:$0xf]
    %v62 = vld [vmem:[%s53 + $0x20] sm:$0xf]
    %v63 = vld [vmem:[%s53 + $0x24] sm:$0xf]
    %v64 = vld [vmem:[%s53 + $0x28] sm:$0xf]
    %v65 = vld [vmem:[%s53 + $0x2c] sm:$0xf]
    %v66 = vld [vmem:[%s53 + $0x30] sm:$0xf]
    %v67 = vld [vmem:[%s53 + $0x34] sm:$0xf]
    %v68 = vld [vmem:[%s53 + $0x38] sm:$0xf]
    %v69 = vld [vmem:[%s53 + $0x3c] sm:$0xf]
    %v70 = vld [vmem:[%s53 + $0x40] sm:$0xf]
    %v71 = vld [vmem:[%s53 + $0x44] sm:$0xf]
    %v72 = vld [vmem:[%s53 + $0x48] sm:$0xf]
    %v73 = vld [vmem:[%s53 + $0x4c] sm:$0xf]
    %v74 = vld [vmem:[%s53 + $0x50] sm:$0xf]
    %v75 = vld [vmem:[%s53 + $0x54] sm:$0xf]
    %v76 = vld [vmem:[%s53 + $0x58] sm:$0xf]
    %v77 = vld [vmem:[%s53 + $0x5c] sm:$0xf]
    %v78 = vld [vmem:[%s53 + $0x60] sm:$0xf]
    %v79 = vld [vmem:[%s53 + $0x64] sm:$0xf]
    %v80 = vld [vmem:[%s53 + $0x68] sm:$0xf]
    %v81 = vld [vmem:[%s53 + $0x6c] sm:$0xf]
    %v82 = vld [vmem:[%s53 + $0x70] sm:$0xf]
    %v83 = vld [vmem:[%s53 + $0x74] sm:$0xf]
    %v84 = vld [vmem:[%s53 + $0x78] sm:$0xf]
    %v85 = vld [vmem:[%s53 + $0x7c] sm:$0xf]
    %s86 = scalar_lea.vmem %s1, 8
    %v87 = vld [vmem:[%s86] sm:$0xf]
    %v88 = vld [vmem:[%s86 + $0x4] sm:$0xf]
    %v121 = vunpack.c.l.b16 %v54
    %v122 = vunpack.c.l.b16 %v55
    %v123 = vunpack.c.l.b16 %v56
    %v124 = vunpack.c.l.b16 %v57
    %v125 = vunpack.c.l.b16 %v58
    %v126 = vunpack.c.l.b16 %v59
    %v127 = vunpack.c.l.b16 %v60
    %v128 = vunpack.c.l.b16 %v61
    %v129 = vunpack.c.l.b16 %v62
    %v130 = vunpack.c.l.b16 %v63
    %v131 = vunpack.c.l.b16 %v64
    %v132 = vunpack.c.l.b16 %v65
    %v133 = vunpack.c.l.b16 %v66
    %v134 = vunpack.c.l.b16 %v67
    %v135 = vunpack.c.l.b16 %v68
    %v136 = vunpack.c.l.b16 %v69
    %v137 = vunpack.c.l.b16 %v70
    %v138 = vunpack.c.l.b16 %v71
    %v139 = vunpack.c.l.b16 %v72
    %v140 = vunpack.c.l.b16 %v73
    %v141 = vunpack.c.l.b16 %v74
    %v142 = vunpack.c.l.b16 %v75
    %v143 = vunpack.c.l.b16 %v76
    %v144 = vunpack.c.l.b16 %v77
    %v145 = vunpack.c.l.b16 %v78
    %v146 = vunpack.c.l.b16 %v79
    %v147 = vunpack.c.l.b16 %v80
    %v148 = vunpack.c.l.b16 %v81
    %v149 = vunpack.c.l.b16 %v82
    %v150 = vunpack.c.l.b16 %v83
    %v151 = vunpack.c.l.b16 %v84
    %v152 = vunpack.c.l.b16 %v85
    %v153 = vpack.c.b16 %v122, %v121
    %v154 = vpack.c.b16 %v124, %v123
    %v155 = vpack.c.b16 %v126, %v125
    %v156 = vpack.c.b16 %v128, %v127
    %v157 = vpack.c.b16 %v130, %v129
    %v158 = vpack.c.b16 %v132, %v131
    %v159 = vpack.c.b16 %v134, %v133
    %v160 = vpack.c.b16 %v136, %v135
    %v161 = vpack.c.b16 %v138, %v137
    %v162 = vpack.c.b16 %v140, %v139
    %v163 = vpack.c.b16 %v142, %v141
    %v164 = vpack.c.b16 %v144, %v143
    %v165 = vpack.c.b16 %v146, %v145
    %v166 = vpack.c.b16 %v148, %v147
    %v167 = vpack.c.b16 %v150, %v149
    %v168 = vpack.c.b16 %v152, %v151
    %v171 = vunpack.c.l.b16 %v87
    %v172 = vunpack.c.l.b16 %v88
    %v173 = vpack.c.b16 %v172, %v171
    %vm175 = vcmask 130048
    %v177 = vsel %vm175, %v153, 0
    %v180 = vsel %vm175, %v154, 0
    %v183 = vsel %vm175, %v155, 0
    %v186 = vsel %vm175, %v156, 0
    %v189 = vsel %vm175, %v157, 0
    %v192 = vsel %vm175, %v158, 0
    %v195 = vsel %vm175, %v159, 0
    %v198 = vsel %vm175, %v160, 0
    %v201 = vsel %vm175, %v161, 0
    %v204 = vsel %vm175, %v162, 0
    %v207 = vsel %vm175, %v163, 0
    %v210 = vsel %vm175, %v164, 0
    %v213 = vsel %vm175, %v165, 0
    %v216 = vsel %vm175, %v166, 0
    %v219 = vsel %vm175, %v167, 0
    %v222 = vsel %vm175, %v168, 0
    %224 = vmatpush.bf16.msra.mxu0 0
    %225 = vmatpush.bf16.msra.mxu0 0
    %226 = vmatpush.bf16.msra.mxu0 0
    %227 = vmatpush.bf16.msra.mxu0 0
    %228 = vmatpush.bf16.msra.mxu0 0
    %229 = vmatpush.bf16.msra.mxu0 0
    %230 = vmatpush.bf16.msra.mxu0 0
    %231 = vmatpush.bf16.msra.mxu0 %v173
    %232 = vmatmul.bf16.gmra.mxu0 %v177
    %v233 = vpop.f32.mrf.mxu0
    %v234 = vadd.f32 0.0, %v233
    %v235 = vpop.f32.mrf.mxu0
    %v236 = vadd.f32 0.0, %v235
    %237 = vmatmul.bf16.gmra.mxu0 %v180
    %v238 = vpop.f32.mrf.mxu0
    %v239 = vadd.f32 0.0, %v238
    %v240 = vpop.f32.mrf.mxu0
    %v241 = vadd.f32 0.0, %v240
    %242 = vmatmul.bf16.gmra.mxu0 %v183
    %v243 = vpop.f32.mrf.mxu0
    %v244 = vadd.f32 0.0, %v243
    %v245 = vpop.f32.mrf.mxu0
    %v246 = vadd.f32 0.0, %v245
    %247 = vmatmul.bf16.gmra.mxu0 %v186
    %v248 = vpop.f32.mrf.mxu0
    %v249 = vadd.f32 0.0, %v248
    %v250 = vpop.f32.mrf.mxu0
    %v251 = vadd.f32 0.0, %v250
    %252 = vmatmul.bf16.gmra.mxu0 %v189
    %v253 = vpop.f32.mrf.mxu0
    %v254 = vadd.f32 0.0, %v253
    %v255 = vpop.f32.mrf.mxu0
    %v256 = vadd.f32 0.0, %v255
    %257 = vmatmul.bf16.gmra.mxu0 %v192
    %v258 = vpop.f32.mrf.mxu0
    %v259 = vadd.f32 0.0, %v258
    %v260 = vpop.f32.mrf.mxu0
    %v261 = vadd.f32 0.0, %v260
    %262 = vmatmul.bf16.gmra.mxu0 %v195
    %v263 = vpop.f32.mrf.mxu0
    %v264 = vadd.f32 0.0, %v263
    %v265 = vpop.f32.mrf.mxu0
    %v266 = vadd.f32 0.0, %v265
    %267 = vmatmul.bf16.gmra.mxu0 %v198
    %v268 = vpop.f32.mrf.mxu0
    %v269 = vadd.f32 0.0, %v268
    %v270 = vpop.f32.mrf.mxu0
    %v271 = vadd.f32 0.0, %v270
    %272 = vmatmul.bf16.gmra.mxu0 %v201
    %v273 = vpop.f32.mrf.mxu0
    %v274 = vadd.f32 0.0, %v273
    %v275 = vpop.f32.mrf.mxu0
    %v276 = vadd.f32 0.0, %v275
    %277 = vmatmul.bf16.gmra.mxu0 %v204
    %v278 = vpop.f32.mrf.mxu0
    %v279 = vadd.f32 0.0, %v278
    %v280 = vpop.f32.mrf.mxu0
    %v281 = vadd.f32 0.0, %v280
    %282 = vmatmul.bf16.gmra.mxu0 %v207
    %v283 = vpop.f32.mrf.mxu0
    %v284 = vadd.f32 0.0, %v283
    %v285 = vpop.f32.mrf.mxu0
    %v286 = vadd.f32 0.0, %v285
    %287 = vmatmul.bf16.gmra.mxu0 %v210
    %v288 = vpop.f32.mrf.mxu0
    %v289 = vadd.f32 0.0, %v288
    %v290 = vpop.f32.mrf.mxu0
    %v291 = vadd.f32 0.0, %v290
    %292 = vmatmul.bf16.gmra.mxu0 %v213
    %v293 = vpop.f32.mrf.mxu0
    %v294 = vadd.f32 0.0, %v293
    %v295 = vpop.f32.mrf.mxu0
    %v296 = vadd.f32 0.0, %v295
    %297 = vmatmul.bf16.gmra.mxu0 %v216
    %v298 = vpop.f32.mrf.mxu0
    %v299 = vadd.f32 0.0, %v298
    %v300 = vpop.f32.mrf.mxu0
    %v301 = vadd.f32 0.0, %v300
    %302 = vmatmul.bf16.gmra.mxu0 %v219
    %v303 = vpop.f32.mrf.mxu0
    %v304 = vadd.f32 0.0, %v303
    %v305 = vpop.f32.mrf.mxu0
    %v306 = vadd.f32 0.0, %v305
    %307 = vmatmul.bf16.gmra.mxu0 %v222
    %v308 = vpop.f32.mrf.mxu0
    %v309 = vadd.f32 0.0, %v308
    %v310 = vpop.f32.mrf.mxu0
    %v311 = vadd.f32 0.0, %v310
    %312 = vdwg.mxu0
    %v345 = vunpack.c.l.b16 %v19
    %v346 = vunpack.c.l.b16 %v20
    %v347 = vunpack.c.l.b16 %v21
    %v348 = vunpack.c.l.b16 %v22
    %v349 = vunpack.c.l.b16 %v23
    %v350 = vunpack.c.l.b16 %v24
    %v351 = vunpack.c.l.b16 %v25
    %v352 = vunpack.c.l.b16 %v26
    %v353 = vunpack.c.l.b16 %v27
    %v354 = vunpack.c.l.b16 %v28
    %v355 = vunpack.c.l.b16 %v29
    %v356 = vunpack.c.l.b16 %v30
    %v357 = vunpack.c.l.b16 %v31
    %v358 = vunpack.c.l.b16 %v32
    %v359 = vunpack.c.l.b16 %v33
    %v360 = vunpack.c.l.b16 %v34
    %v361 = vunpack.c.l.b16 %v35
    %v362 = vunpack.c.l.b16 %v36
    %v363 = vunpack.c.l.b16 %v37
    %v364 = vunpack.c.l.b16 %v38
    %v365 = vunpack.c.l.b16 %v39
    %v366 = vunpack.c.l.b16 %v40
    %v367 = vunpack.c.l.b16 %v41
    %v368 = vunpack.c.l.b16 %v42
    %v369 = vunpack.c.l.b16 %v43
    %v370 = vunpack.c.l.b16 %v44
    %v371 = vunpack.c.l.b16 %v45
    %v372 = vunpack.c.l.b16 %v46
    %v373 = vunpack.c.l.b16 %v47
    %v374 = vunpack.c.l.b16 %v48
    %v375 = vunpack.c.l.b16 %v49
    %v376 = vunpack.c.l.b16 %v50
    %v377 = vpack.c.b16 %v346, %v345
    %v378 = vpack.c.b16 %v348, %v347
    %v379 = vpack.c.b16 %v350, %v349
    %v380 = vpack.c.b16 %v352, %v351
    %v381 = vpack.c.b16 %v354, %v353
    %v382 = vpack.c.b16 %v356, %v355
    %v383 = vpack.c.b16 %v358, %v357
    %v384 = vpack.c.b16 %v360, %v359
    %v385 = vpack.c.b16 %v362, %v361
    %v386 = vpack.c.b16 %v364, %v363
    %v387 = vpack.c.b16 %v366, %v365
    %v388 = vpack.c.b16 %v368, %v367
    %v389 = vpack.c.b16 %v370, %v369
    %v390 = vpack.c.b16 %v372, %v371
    %v391 = vpack.c.b16 %v374, %v373
    %v392 = vpack.c.b16 %v376, %v375
    %v395 = vunpack.c.l.b16 %v51
    %v396 = vunpack.c.l.b16 %v52
    %v397 = vpack.c.b16 %v396, %v395
    %v400 = vsel %vm175, %v377, 0
    %v403 = vsel %vm175, %v378, 0
    %v406 = vsel %vm175, %v379, 0
    %v409 = vsel %vm175, %v380, 0
    %v412 = vsel %vm175, %v381, 0
    %v415 = vsel %vm175, %v382, 0
    %v418 = vsel %vm175, %v383, 0
    %v421 = vsel %vm175, %v384, 0
    %v424 = vsel %vm175, %v385, 0
    %v427 = vsel %vm175, %v386, 0
    %v430 = vsel %vm175, %v387, 0
    %v433 = vsel %vm175, %v388, 0
    %v436 = vsel %vm175, %v389, 0
    %v439 = vsel %vm175, %v390, 0
    %v442 = vsel %vm175, %v391, 0
    %v445 = vsel %vm175, %v392, 0
    %447 = vmatpush.bf16.msra.mxu0 0
    %448 = vmatpush.bf16.msra.mxu0 0
    %449 = vmatpush.bf16.msra.mxu0 0
    %450 = vmatpush.bf16.msra.mxu0 0
    %451 = vmatpush.bf16.msra.mxu0 0
    %452 = vmatpush.bf16.msra.mxu0 0
    %453 = vmatpush.bf16.msra.mxu0 0
    %454 = vmatpush.bf16.msra.mxu0 %v397
    %455 = vmatmul.bf16.gmra.mxu0 %v400
    %v456 = vpop.f32.mrf.mxu0
    %v457 = vadd.f32 %v234, %v456
    %v458 = vpop.f32.mrf.mxu0
    %v459 = vadd.f32 %v236, %v458
    %460 = vmatmul.bf16.gmra.mxu0 %v403
    %v461 = vpop.f32.mrf.mxu0
    %v462 = vadd.f32 %v239, %v461
    %v463 = vpop.f32.mrf.mxu0
    %v464 = vadd.f32 %v241, %v463
    %465 = vmatmul.bf16.gmra.mxu0 %v406
    %v466 = vpop.f32.mrf.mxu0
    %v467 = vadd.f32 %v244, %v466
    %v468 = vpop.f32.mrf.mxu0
    %v469 = vadd.f32 %v246, %v468
    %470 = vmatmul.bf16.gmra.mxu0 %v409
    %v471 = vpop.f32.mrf.mxu0
    %v472 = vadd.f32 %v249, %v471
    %v473 = vpop.f32.mrf.mxu0
    %v474 = vadd.f32 %v251, %v473
    %475 = vmatmul.bf16.gmra.mxu0 %v412
    %v476 = vpop.f32.mrf.mxu0
    %v477 = vadd.f32 %v254, %v476
    %v478 = vpop.f32.mrf.mxu0
    %v479 = vadd.f32 %v256, %v478
    %480 = vmatmul.bf16.gmra.mxu0 %v415
    %v481 = vpop.f32.mrf.mxu0
    %v482 = vadd.f32 %v259, %v481
    %v483 = vpop.f32.mrf.mxu0
    %v484 = vadd.f32 %v261, %v483
    %485 = vmatmul.bf16.gmra.mxu0 %v418
    %v486 = vpop.f32.mrf.mxu0
    %v487 = vadd.f32 %v264, %v486
    %v488 = vpop.f32.mrf.mxu0
    %v489 = vadd.f32 %v266, %v488
    %490 = vmatmul.bf16.gmra.mxu0 %v421
    %v491 = vpop.f32.mrf.mxu0
    %v492 = vadd.f32 %v269, %v491
    %v493 = vpop.f32.mrf.mxu0
    %v494 = vadd.f32 %v271, %v493
    %495 = vmatmul.bf16.gmra.mxu0 %v424
    %v496 = vpop.f32.mrf.mxu0
    %v497 = vadd.f32 %v274, %v496
    %v498 = vpop.f32.mrf.mxu0
    %v499 = vadd.f32 %v276, %v498
    %500 = vmatmul.bf16.gmra.mxu0 %v427
    %v501 = vpop.f32.mrf.mxu0
    %v502 = vadd.f32 %v279, %v501
    %v503 = vpop.f32.mrf.mxu0
    %v504 = vadd.f32 %v281, %v503
    %505 = vmatmul.bf16.gmra.mxu0 %v430
    %v506 = vpop.f32.mrf.mxu0
    %v507 = vadd.f32 %v284, %v506
    %v508 = vpop.f32.mrf.mxu0
    %v509 = vadd.f32 %v286, %v508
    %510 = vmatmul.bf16.gmra.mxu0 %v433
    %v511 = vpop.f32.mrf.mxu0
    %v512 = vadd.f32 %v289, %v511
    %v513 = vpop.f32.mrf.mxu0
    %v514 = vadd.f32 %v291, %v513
    %515 = vmatmul.bf16.gmra.mxu0 %v436
    %v516 = vpop.f32.mrf.mxu0
    %v517 = vadd.f32 %v294, %v516
    %v518 = vpop.f32.mrf.mxu0
    %v519 = vadd.f32 %v296, %v518
    %520 = vmatmul.bf16.gmra.mxu0 %v439
    %v521 = vpop.f32.mrf.mxu0
    %v522 = vadd.f32 %v299, %v521
    %v523 = vpop.f32.mrf.mxu0
    %v524 = vadd.f32 %v301, %v523
    %525 = vmatmul.bf16.gmra.mxu0 %v442
    %v526 = vpop.f32.mrf.mxu0
    %v527 = vadd.f32 %v304, %v526
    %v528 = vpop.f32.mrf.mxu0
    %v529 = vadd.f32 %v306, %v528
    %530 = vmatmul.bf16.gmra.mxu0 %v445
    %v531 = vpop.f32.mrf.mxu0
    %v532 = vadd.f32 %v309, %v531
    %v533 = vpop.f32.mrf.mxu0
    %v534 = vadd.f32 %v311, %v533
    %535 = vdwg.mxu0
    %s536 = scalar_lea.vmem %s0, 16
    %v537 = vld [vmem:[%s536] sm:$0xf]
    %v538 = vld [vmem:[%s536 + $0x4] sm:$0xf]
    %v539 = vld [vmem:[%s536 + $0x8] sm:$0xf]
    %v540 = vld [vmem:[%s536 + $0xc] sm:$0xf]
    %v541 = vld [vmem:[%s536 + $0x10] sm:$0xf]
    %v542 = vld [vmem:[%s536 + $0x14] sm:$0xf]
    %v543 = vld [vmem:[%s536 + $0x18] sm:$0xf]
    %v544 = vld [vmem:[%s536 + $0x1c] sm:$0xf]
    %v545 = vld [vmem:[%s536 + $0x20] sm:$0xf]
    %v546 = vld [vmem:[%s536 + $0x24] sm:$0xf]
    %v547 = vld [vmem:[%s536 + $0x28] sm:$0xf]
    %v548 = vld [vmem:[%s536 + $0x2c] sm:$0xf]
    %v549 = vld [vmem:[%s536 + $0x30] sm:$0xf]
    %v550 = vld [vmem:[%s536 + $0x34] sm:$0xf]
    %v551 = vld [vmem:[%s536 + $0x38] sm:$0xf]
    %v552 = vld [vmem:[%s536 + $0x3c] sm:$0xf]
    %v553 = vld [vmem:[%s536 + $0x40] sm:$0xf]
    %v554 = vld [vmem:[%s536 + $0x44] sm:$0xf]
    %v555 = vld [vmem:[%s536 + $0x48] sm:$0xf]
    %v556 = vld [vmem:[%s536 + $0x4c] sm:$0xf]
    %v557 = vld [vmem:[%s536 + $0x50] sm:$0xf]
    %v558 = vld [vmem:[%s536 + $0x54] sm:$0xf]
    %v559 = vld [vmem:[%s536 + $0x58] sm:$0xf]
    %v560 = vld [vmem:[%s536 + $0x5c] sm:$0xf]
    %v561 = vld [vmem:[%s536 + $0x60] sm:$0xf]
    %v562 = vld [vmem:[%s536 + $0x64] sm:$0xf]
    %v563 = vld [vmem:[%s536 + $0x68] sm:$0xf]
    %v564 = vld [vmem:[%s536 + $0x6c] sm:$0xf]
    %v565 = vld [vmem:[%s536 + $0x70] sm:$0xf]
    %v566 = vld [vmem:[%s536 + $0x74] sm:$0xf]
    %v567 = vld [vmem:[%s536 + $0x78] sm:$0xf]
    %v568 = vld [vmem:[%s536 + $0x7c] sm:$0xf]
    %s569 = scalar_lea.vmem %s1, 16
    %v570 = vld [vmem:[%s569] sm:$0xf]
    %v571 = vld [vmem:[%s569 + $0x4] sm:$0xf]
    %v604 = vunpack.c.l.b16 %v537
    %v605 = vunpack.c.l.b16 %v538
    %v606 = vunpack.c.l.b16 %v539
    %v607 = vunpack.c.l.b16 %v540
    %v608 = vunpack.c.l.b16 %v541
    %v609 = vunpack.c.l.b16 %v542
    %v610 = vunpack.c.l.b16 %v543
    %v611 = vunpack.c.l.b16 %v544
    %v612 = vunpack.c.l.b16 %v545
    %v613 = vunpack.c.l.b16 %v546
    %v614 = vunpack.c.l.b16 %v547
    %v615 = vunpack.c.l.b16 %v548
    %v616 = vunpack.c.l.b16 %v549
    %v617 = vunpack.c.l.b16 %v550
    %v618 = vunpack.c.l.b16 %v551
    %v619 = vunpack.c.l.b16 %v552
    %v620 = vunpack.c.l.b16 %v553
    %v621 = vunpack.c.l.b16 %v554
    %v622 = vunpack.c.l.b16 %v555
    %v623 = vunpack.c.l.b16 %v556
    %v624 = vunpack.c.l.b16 %v557
    %v625 = vunpack.c.l.b16 %v558
    %v626 = vunpack.c.l.b16 %v559
    %v627 = vunpack.c.l.b16 %v560
    %v628 = vunpack.c.l.b16 %v561
    %v629 = vunpack.c.l.b16 %v562
    %v630 = vunpack.c.l.b16 %v563
    %v631 = vunpack.c.l.b16 %v564
    %v632 = vunpack.c.l.b16 %v565
    %v633 = vunpack.c.l.b16 %v566
    %v634 = vunpack.c.l.b16 %v567
    %v635 = vunpack.c.l.b16 %v568
    %v636 = vpack.c.b16 %v605, %v604
    %v637 = vpack.c.b16 %v607, %v606
    %v638 = vpack.c.b16 %v609, %v608
    %v639 = vpack.c.b16 %v611, %v610
    %v640 = vpack.c.b16 %v613, %v612
    %v641 = vpack.c.b16 %v615, %v614
    %v642 = vpack.c.b16 %v617, %v616
    %v643 = vpack.c.b16 %v619, %v618
    %v644 = vpack.c.b16 %v621, %v620
    %v645 = vpack.c.b16 %v623, %v622
    %v646 = vpack.c.b16 %v625, %v624
    %v647 = vpack.c.b16 %v627, %v626
    %v648 = vpack.c.b16 %v629, %v628
    %v649 = vpack.c.b16 %v631, %v630
    %v650 = vpack.c.b16 %v633, %v632
    %v651 = vpack.c.b16 %v635, %v634
    %v654 = vunpack.c.l.b16 %v570
    %v655 = vunpack.c.l.b16 %v571
    %v656 = vpack.c.b16 %v655, %v654
    %v659 = vsel %vm175, %v636, 0
    %v662 = vsel %vm175, %v637, 0
    %v665 = vsel %vm175, %v638, 0
    %v668 = vsel %vm175, %v639, 0
    %v671 = vsel %vm175, %v640, 0
    %v674 = vsel %vm175, %v641, 0
    %v677 = vsel %vm175, %v642, 0
    %v680 = vsel %vm175, %v643, 0
    %v683 = vsel %vm175, %v644, 0
    %v686 = vsel %vm175, %v645, 0
    %v689 = vsel %vm175, %v646, 0
    %v692 = vsel %vm175, %v647, 0
    %v695 = vsel %vm175, %v648, 0
    %v698 = vsel %vm175, %v649, 0
    %v701 = vsel %vm175, %v650, 0
    %v704 = vsel %vm175, %v651, 0
    %706 = vmatpush.bf16.msra.mxu0 0
    %707 = vmatpush.bf16.msra.mxu0 0
    %708 = vmatpush.bf16.msra.mxu0 0
    %709 = vmatpush.bf16.msra.mxu0 0
    %710 = vmatpush.bf16.msra.mxu0 0
    %711 = vmatpush.bf16.msra.mxu0 0
    %712 = vmatpush.bf16.msra.mxu0 0
    %713 = vmatpush.bf16.msra.mxu0 %v656
    %714 = vmatmul.bf16.gmra.mxu0 %v659
    %v715 = vpop.f32.mrf.mxu0
    %v716 = vadd.f32 0.0, %v715
    %v717 = vpop.f32.mrf.mxu0
    %v718 = vadd.f32 0.0, %v717
    %719 = vmatmul.bf16.gmra.mxu0 %v662
    %v720 = vpop.f32.mrf.mxu0
    %v721 = vadd.f32 0.0, %v720
    %v722 = vpop.f32.mrf.mxu0
    %v723 = vadd.f32 0.0, %v722
    %724 = vmatmul.bf16.gmra.mxu0 %v665
    %v725 = vpop.f32.mrf.mxu0
    %v726 = vadd.f32 0.0, %v725
    %v727 = vpop.f32.mrf.mxu0
    %v728 = vadd.f32 0.0, %v727
    %729 = vmatmul.bf16.gmra.mxu0 %v668
    %v730 = vpop.f32.mrf.mxu0
    %v731 = vadd.f32 0.0, %v730
    %v732 = vpop.f32.mrf.mxu0
    %v733 = vadd.f32 0.0, %v732
    %734 = vmatmul.bf16.gmra.mxu0 %v671
    %v735 = vpop.f32.mrf.mxu0
    %v736 = vadd.f32 0.0, %v735
    %v737 = vpop.f32.mrf.mxu0
    %v738 = vadd.f32 0.0, %v737
    %739 = vmatmul.bf16.gmra.mxu0 %v674
    %v740 = vpop.f32.mrf.mxu0
    %v741 = vadd.f32 0.0, %v740
    %v742 = vpop.f32.mrf.mxu0
    %v743 = vadd.f32 0.0, %v742
    %744 = vmatmul.bf16.gmra.mxu0 %v677
    %v745 = vpop.f32.mrf.mxu0
    %v746 = vadd.f32 0.0, %v745
    %v747 = vpop.f32.mrf.mxu0
    %v748 = vadd.f32 0.0, %v747
    %749 = vmatmul.bf16.gmra.mxu0 %v680
    %v750 = vpop.f32.mrf.mxu0
    %v751 = vadd.f32 0.0, %v750
    %v752 = vpop.f32.mrf.mxu0
    %v753 = vadd.f32 0.0, %v752
    %754 = vmatmul.bf16.gmra.mxu0 %v683
    %v755 = vpop.f32.mrf.mxu0
    %v756 = vadd.f32 0.0, %v755
    %v757 = vpop.f32.mrf.mxu0
    %v758 = vadd.f32 0.0, %v757
    %759 = vmatmul.bf16.gmra.mxu0 %v686
    %v760 = vpop.f32.mrf.mxu0
    %v761 = vadd.f32 0.0, %v760
    %v762 = vpop.f32.mrf.mxu0
    %v763 = vadd.f32 0.0, %v762
    %764 = vmatmul.bf16.gmra.mxu0 %v689
    %v765 = vpop.f32.mrf.mxu0
    %v766 = vadd.f32 0.0, %v765
    %v767 = vpop.f32.mrf.mxu0
    %v768 = vadd.f32 0.0, %v767
    %769 = vmatmul.bf16.gmra.mxu0 %v692
    %v770 = vpop.f32.mrf.mxu0
    %v771 = vadd.f32 0.0, %v770
    %v772 = vpop.f32.mrf.mxu0
    %v773 = vadd.f32 0.0, %v772
    %774 = vmatmul.bf16.gmra.mxu0 %v695
    %v775 = vpop.f32.mrf.mxu0
    %v776 = vadd.f32 0.0, %v775
    %v777 = vpop.f32.mrf.mxu0
    %v778 = vadd.f32 0.0, %v777
    %779 = vmatmul.bf16.gmra.mxu0 %v698
    %v780 = vpop.f32.mrf.mxu0
    %v781 = vadd.f32 0.0, %v780
    %v782 = vpop.f32.mrf.mxu0
    %v783 = vadd.f32 0.0, %v782
    %784 = vmatmul.bf16.gmra.mxu0 %v701
    %v785 = vpop.f32.mrf.mxu0
    %v786 = vadd.f32 0.0, %v785
    %v787 = vpop.f32.mrf.mxu0
    %v788 = vadd.f32 0.0, %v787
    %789 = vmatmul.bf16.gmra.mxu0 %v704
    %v790 = vpop.f32.mrf.mxu0
    %v791 = vadd.f32 0.0, %v790
    %v792 = vpop.f32.mrf.mxu0
    %v793 = vadd.f32 0.0, %v792
    %794 = vdwg.mxu0
    %v795 = vadd.f32 %v457, %v716
    %v796 = vadd.f32 %v459, %v718
    %v797 = vadd.f32 %v462, %v721
    %v798 = vadd.f32 %v464, %v723
    %v799 = vadd.f32 %v467, %v726
    %v800 = vadd.f32 %v469, %v728
    %v801 = vadd.f32 %v472, %v731
    %v802 = vadd.f32 %v474, %v733
    %v803 = vadd.f32 %v477, %v736
    %v804 = vadd.f32 %v479, %v738
    %v805 = vadd.f32 %v482, %v741
    %v806 = vadd.f32 %v484, %v743
    %v807 = vadd.f32 %v487, %v746
    %v808 = vadd.f32 %v489, %v748
    %v809 = vadd.f32 %v492, %v751
    %v810 = vadd.f32 %v494, %v753
    %v811 = vadd.f32 %v497, %v756
    %v812 = vadd.f32 %v499, %v758
    %v813 = vadd.f32 %v502, %v761
    %v814 = vadd.f32 %v504, %v763
    %v815 = vadd.f32 %v507, %v766
    %v816 = vadd.f32 %v509, %v768
    %v817 = vadd.f32 %v512, %v771
    %v818 = vadd.f32 %v514, %v773
    %v819 = vadd.f32 %v517, %v776
    %v820 = vadd.f32 %v519, %v778
    %v821 = vadd.f32 %v522, %v781
    %v822 = vadd.f32 %v524, %v783
    %v823 = vadd.f32 %v527, %v786
    %v824 = vadd.f32 %v529, %v788
    %v825 = vadd.f32 %v532, %v791
    %v826 = vadd.f32 %v534, %v793
    %s827 = scalar_lea.vmem %s0, 24
    %v828 = vld [vmem:[%s827] sm:$0xf]
    %v829 = vld [vmem:[%s827 + $0x4] sm:$0xf]
    %v830 = vld [vmem:[%s827 + $0x8] sm:$0xf]
    %v831 = vld [vmem:[%s827 + $0xc] sm:$0xf]
    %v832 = vld [vmem:[%s827 + $0x10] sm:$0xf]
    %v833 = vld [vmem:[%s827 + $0x14] sm:$0xf]
    %v834 = vld [vmem:[%s827 + $0x18] sm:$0xf]
    %v835 = vld [vmem:[%s827 + $0x1c] sm:$0xf]
    %v836 = vld [vmem:[%s827 + $0x20] sm:$0xf]
    %v837 = vld [vmem:[%s827 + $0x24] sm:$0xf]
    %v838 = vld [vmem:[%s827 + $0x28] sm:$0xf]
    %v839 = vld [vmem:[%s827 + $0x2c] sm:$0xf]
    %v840 = vld [vmem:[%s827 + $0x30] sm:$0xf]
    %v841 = vld [vmem:[%s827 + $0x34] sm:$0xf]
    %v842 = vld [vmem:[%s827 + $0x38] sm:$0xf]
    %v843 = vld [vmem:[%s827 + $0x3c] sm:$0xf]
    %v844 = vld [vmem:[%s827 + $0x40] sm:$0xf]
    %v845 = vld [vmem:[%s827 + $0x44] sm:$0xf]
    %v846 = vld [vmem:[%s827 + $0x48] sm:$0xf]
    %v847 = vld [vmem:[%s827 + $0x4c] sm:$0xf]
    %v848 = vld [vmem:[%s827 + $0x50] sm:$0xf]
    %v849 = vld [vmem:[%s827 + $0x54] sm:$0xf]
    %v850 = vld [vmem:[%s827 + $0x58] sm:$0xf]
    %v851 = vld [vmem:[%s827 + $0x5c] sm:$0xf]
    %v852 = vld [vmem:[%s827 + $0x60] sm:$0xf]
    %v853 = vld [vmem:[%s827 + $0x64] sm:$0xf]
    %v854 = vld [vmem:[%s827 + $0x68] sm:$0xf]
    %v855 = vld [vmem:[%s827 + $0x6c] sm:$0xf]
    %v856 = vld [vmem:[%s827 + $0x70] sm:$0xf]
    %v857 = vld [vmem:[%s827 + $0x74] sm:$0xf]
    %v858 = vld [vmem:[%s827 + $0x78] sm:$0xf]
    %v859 = vld [vmem:[%s827 + $0x7c] sm:$0xf]
    %s860 = scalar_lea.vmem %s1, 24
    %v861 = vld [vmem:[%s860] sm:$0xf]
    %v862 = vld [vmem:[%s860 + $0x4] sm:$0xf]
    %v895 = vunpack.c.l.b16 %v828
    %v896 = vunpack.c.l.b16 %v829
    %v897 = vunpack.c.l.b16 %v830
    %v898 = vunpack.c.l.b16 %v831
    %v899 = vunpack.c.l.b16 %v832
    %v900 = vunpack.c.l.b16 %v833
    %v901 = vunpack.c.l.b16 %v834
    %v902 = vunpack.c.l.b16 %v835
    %v903 = vunpack.c.l.b16 %v836
    %v904 = vunpack.c.l.b16 %v837
    %v905 = vunpack.c.l.b16 %v838
    %v906 = vunpack.c.l.b16 %v839
    %v907 = vunpack.c.l.b16 %v840
    %v908 = vunpack.c.l.b16 %v841
    %v909 = vunpack.c.l.b16 %v842
    %v910 = vunpack.c.l.b16 %v843
    %v911 = vunpack.c.l.b16 %v844
    %v912 = vunpack.c.l.b16 %v845
    %v913 = vunpack.c.l.b16 %v846
    %v914 = vunpack.c.l.b16 %v847
    %v915 = vunpack.c.l.b16 %v848
    %v916 = vunpack.c.l.b16 %v849
    %v917 = vunpack.c.l.b16 %v850
    %v918 = vunpack.c.l.b16 %v851
    %v919 = vunpack.c.l.b16 %v852
    %v920 = vunpack.c.l.b16 %v853
    %v921 = vunpack.c.l.b16 %v854
    %v922 = vunpack.c.l.b16 %v855
    %v923 = vunpack.c.l.b16 %v856
    %v924 = vunpack.c.l.b16 %v857
    %v925 = vunpack.c.l.b16 %v858
    %v926 = vunpack.c.l.b16 %v859
    %v927 = vpack.c.b16 %v896, %v895
    %v928 = vpack.c.b16 %v898, %v897
    %v929 = vpack.c.b16 %v900, %v899
    %v930 = vpack.c.b16 %v902, %v901
    %v931 = vpack.c.b16 %v904, %v903
    %v932 = vpack.c.b16 %v906, %v905
    %v933 = vpack.c.b16 %v908, %v907
    %v934 = vpack.c.b16 %v910, %v909
    %v935 = vpack.c.b16 %v912, %v911
    %v936 = vpack.c.b16 %v914, %v913
    %v937 = vpack.c.b16 %v916, %v915
    %v938 = vpack.c.b16 %v918, %v917
    %v939 = vpack.c.b16 %v920, %v919
    %v940 = vpack.c.b16 %v922, %v921
    %v941 = vpack.c.b16 %v924, %v923
    %v942 = vpack.c.b16 %v926, %v925
    %v945 = vunpack.c.l.b16 %v861
    %v946 = vunpack.c.l.b16 %v862
    %v947 = vpack.c.b16 %v946, %v945
    %v950 = vsel %vm175, %v927, 0
    %v953 = vsel %vm175, %v928, 0
    %v956 = vsel %vm175, %v929, 0
    %v959 = vsel %vm175, %v930, 0
    %v962 = vsel %vm175, %v931, 0
    %v965 = vsel %vm175, %v932, 0
    %v968 = vsel %vm175, %v933, 0
    %v971 = vsel %vm175, %v934, 0
    %v974 = vsel %vm175, %v935, 0
    %v977 = vsel %vm175, %v936, 0
    %v980 = vsel %vm175, %v937, 0
    %v983 = vsel %vm175, %v938, 0
    %v986 = vsel %vm175, %v939, 0
    %v989 = vsel %vm175, %v940, 0
    %v992 = vsel %vm175, %v941, 0
    %v995 = vsel %vm175, %v942, 0
    %997 = vmatpush.bf16.msra.mxu0 0
    %998 = vmatpush.bf16.msra.mxu0 0
    %999 = vmatpush.bf16.msra.mxu0 0
    %1000 = vmatpush.bf16.msra.mxu0 0
    %1001 = vmatpush.bf16.msra.mxu0 0
    %1002 = vmatpush.bf16.msra.mxu0 0
    %1003 = vmatpush.bf16.msra.mxu0 0
    %1004 = vmatpush.bf16.msra.mxu0 %v947
    %1005 = vmatmul.bf16.gmra.mxu0 %v950
    %v1006 = vpop.f32.mrf.mxu0
    %v1007 = vadd.f32 0.0, %v1006
    %v1008 = vpop.f32.mrf.mxu0
    %v1009 = vadd.f32 0.0, %v1008
    %1010 = vmatmul.bf16.gmra.mxu0 %v953
    %v1011 = vpop.f32.mrf.mxu0
    %v1012 = vadd.f32 0.0, %v1011
    %v1013 = vpop.f32.mrf.mxu0
    %v1014 = vadd.f32 0.0, %v1013
    %1015 = vmatmul.bf16.gmra.mxu0 %v956
    %v1016 = vpop.f32.mrf.mxu0
    %v1017 = vadd.f32 0.0, %v1016
    %v1018 = vpop.f32.mrf.mxu0
    %v1019 = vadd.f32 0.0, %v1018
    %1020 = vmatmul.bf16.gmra.mxu0 %v959
    %v1021 = vpop.f32.mrf.mxu0
    %v1022 = vadd.f32 0.0, %v1021
    %v1023 = vpop.f32.mrf.mxu0
    %v1024 = vadd.f32 0.0, %v1023
    %1025 = vmatmul.bf16.gmra.mxu0 %v962
    %v1026 = vpop.f32.mrf.mxu0
    %v1027 = vadd.f32 0.0, %v1026
    %v1028 = vpop.f32.mrf.mxu0
    %v1029 = vadd.f32 0.0, %v1028
    %1030 = vmatmul.bf16.gmra.mxu0 %v965
    %v1031 = vpop.f32.mrf.mxu0
    %v1032 = vadd.f32 0.0, %v1031
    %v1033 = vpop.f32.mrf.mxu0
    %v1034 = vadd.f32 0.0, %v1033
    %1035 = vmatmul.bf16.gmra.mxu0 %v968
    %v1036 = vpop.f32.mrf.mxu0
    %v1037 = vadd.f32 0.0, %v1036
    %v1038 = vpop.f32.mrf.mxu0
    %v1039 = vadd.f32 0.0, %v1038
    %1040 = vmatmul.bf16.gmra.mxu0 %v971
    %v1041 = vpop.f32.mrf.mxu0
    %v1042 = vadd.f32 0.0, %v1041
    %v1043 = vpop.f32.mrf.mxu0
    %v1044 = vadd.f32 0.0, %v1043
    %1045 = vmatmul.bf16.gmra.mxu0 %v974
    %v1046 = vpop.f32.mrf.mxu0
    %v1047 = vadd.f32 0.0, %v1046
    %v1048 = vpop.f32.mrf.mxu0
    %v1049 = vadd.f32 0.0, %v1048
    %1050 = vmatmul.bf16.gmra.mxu0 %v977
    %v1051 = vpop.f32.mrf.mxu0
    %v1052 = vadd.f32 0.0, %v1051
    %v1053 = vpop.f32.mrf.mxu0
    %v1054 = vadd.f32 0.0, %v1053
    %1055 = vmatmul.bf16.gmra.mxu0 %v980
    %v1056 = vpop.f32.mrf.mxu0
    %v1057 = vadd.f32 0.0, %v1056
    %v1058 = vpop.f32.mrf.mxu0
    %v1059 = vadd.f32 0.0, %v1058
    %1060 = vmatmul.bf16.gmra.mxu0 %v983
    %v1061 = vpop.f32.mrf.mxu0
    %v1062 = vadd.f32 0.0, %v1061
    %v1063 = vpop.f32.mrf.mxu0
    %v1064 = vadd.f32 0.0, %v1063
    %1065 = vmatmul.bf16.gmra.mxu0 %v986
    %v1066 = vpop.f32.mrf.mxu0
    %v1067 = vadd.f32 0.0, %v1066
    %v1068 = vpop.f32.mrf.mxu0
    %v1069 = vadd.f32 0.0, %v1068
    %1070 = vmatmul.bf16.gmra.mxu0 %v989
    %v1071 = vpop.f32.mrf.mxu0
    %v1072 = vadd.f32 0.0, %v1071
    %v1073 = vpop.f32.mrf.mxu0
    %v1074 = vadd.f32 0.0, %v1073
    %1075 = vmatmul.bf16.gmra.mxu0 %v992
    %v1076 = vpop.f32.mrf.mxu0
    %v1077 = vadd.f32 0.0, %v1076
    %v1078 = vpop.f32.mrf.mxu0
    %v1079 = vadd.f32 0.0, %v1078
    %1080 = vmatmul.bf16.gmra.mxu0 %v995
    %v1081 = vpop.f32.mrf.mxu0
    %v1082 = vadd.f32 0.0, %v1081
    %v1083 = vpop.f32.mrf.mxu0
    %v1084 = vadd.f32 0.0, %v1083
    %1085 = vdwg.mxu0
    %v1086 = vadd.f32 %v795, %v1007
    %v1087 = vadd.f32 %v796, %v1009
    %v1088 = vadd.f32 %v797, %v1012
    %v1089 = vadd.f32 %v798, %v1014
    %v1090 = vadd.f32 %v799, %v1017
    %v1091 = vadd.f32 %v800, %v1019
    %v1092 = vadd.f32 %v801, %v1022
    %v1093 = vadd.f32 %v802, %v1024
    %v1094 = vadd.f32 %v803, %v1027
    %v1095 = vadd.f32 %v804, %v1029
    %v1096 = vadd.f32 %v805, %v1032
    %v1097 = vadd.f32 %v806, %v1034
    %v1098 = vadd.f32 %v807, %v1037
    %v1099 = vadd.f32 %v808, %v1039
    %v1100 = vadd.f32 %v809, %v1042
    %v1101 = vadd.f32 %v810, %v1044
    %v1102 = vadd.f32 %v811, %v1047
    %v1103 = vadd.f32 %v812, %v1049
    %v1104 = vadd.f32 %v813, %v1052
    %v1105 = vadd.f32 %v814, %v1054
    %v1106 = vadd.f32 %v815, %v1057
    %v1107 = vadd.f32 %v816, %v1059
    %v1108 = vadd.f32 %v817, %v1062
    %v1109 = vadd.f32 %v818, %v1064
    %v1110 = vadd.f32 %v819, %v1067
    %v1111 = vadd.f32 %v820, %v1069
    %v1112 = vadd.f32 %v821, %v1072
    %v1113 = vadd.f32 %v822, %v1074
    %v1114 = vadd.f32 %v823, %v1077
    %v1115 = vadd.f32 %v824, %v1079
    %v1116 = vadd.f32 %v825, %v1082
    %v1117 = vadd.f32 %v826, %v1084
    %v1118 = vld [vmem:[%s2] sm:$0x1]
    %v1120 = vperm.slane %v1118, 0
    %v1122 = vadd.f32 %v1086, %v1120
    %v1123 = vadd.f32 %v1087, %v1120
    %v1124 = vadd.f32 %v1088, %v1120
    %v1125 = vadd.f32 %v1089, %v1120
    %v1126 = vadd.f32 %v1090, %v1120
    %v1127 = vadd.f32 %v1091, %v1120
    %v1128 = vadd.f32 %v1092, %v1120
    %v1129 = vadd.f32 %v1093, %v1120
    %v1130 = vadd.f32 %v1094, %v1120
    %v1131 = vadd.f32 %v1095, %v1120
    %v1132 = vadd.f32 %v1096, %v1120
    %v1133 = vadd.f32 %v1097, %v1120
    %v1134 = vadd.f32 %v1098, %v1120
    %v1135 = vadd.f32 %v1099, %v1120
    %v1136 = vadd.f32 %v1100, %v1120
    %v1137 = vadd.f32 %v1101, %v1120
    %v1138 = vadd.f32 %v1102, %v1120
    %v1139 = vadd.f32 %v1103, %v1120
    %v1140 = vadd.f32 %v1104, %v1120
    %v1141 = vadd.f32 %v1105, %v1120
    %v1142 = vadd.f32 %v1106, %v1120
    %v1143 = vadd.f32 %v1107, %v1120
    %v1144 = vadd.f32 %v1108, %v1120
    %v1145 = vadd.f32 %v1109, %v1120
    %v1146 = vadd.f32 %v1110, %v1120
    %v1147 = vadd.f32 %v1111, %v1120
    %v1148 = vadd.f32 %v1112, %v1120
    %v1149 = vadd.f32 %v1113, %v1120
    %v1150 = vadd.f32 %v1114, %v1120
    %v1151 = vadd.f32 %v1115, %v1120
    %v1152 = vadd.f32 %v1116, %v1120
    %v1153 = vadd.f32 %v1117, %v1120
    %v1154 = vmax.f32 %v1122, 0.0
    %v1155 = vmax.f32 %v1123, 0.0
    %v1156 = vmax.f32 %v1124, 0.0
    %v1157 = vmax.f32 %v1125, 0.0
    %v1158 = vmax.f32 %v1126, 0.0
    %v1159 = vmax.f32 %v1127, 0.0
    %v1160 = vmax.f32 %v1128, 0.0
    %v1161 = vmax.f32 %v1129, 0.0
    %v1162 = vmax.f32 %v1130, 0.0
    %v1163 = vmax.f32 %v1131, 0.0
    %v1164 = vmax.f32 %v1132, 0.0
    %v1165 = vmax.f32 %v1133, 0.0
    %v1166 = vmax.f32 %v1134, 0.0
    %v1167 = vmax.f32 %v1135, 0.0
    %v1168 = vmax.f32 %v1136, 0.0
    %v1169 = vmax.f32 %v1137, 0.0
    %v1170 = vmax.f32 %v1138, 0.0
    %v1171 = vmax.f32 %v1139, 0.0
    %v1172 = vmax.f32 %v1140, 0.0
    %v1173 = vmax.f32 %v1141, 0.0
    %v1174 = vmax.f32 %v1142, 0.0
    %v1175 = vmax.f32 %v1143, 0.0
    %v1176 = vmax.f32 %v1144, 0.0
    %v1177 = vmax.f32 %v1145, 0.0
    %v1178 = vmax.f32 %v1146, 0.0
    %v1179 = vmax.f32 %v1147, 0.0
    %v1180 = vmax.f32 %v1148, 0.0
    %v1181 = vmax.f32 %v1149, 0.0
    %v1182 = vmax.f32 %v1150, 0.0
    %v1183 = vmax.f32 %v1151, 0.0
    %v1184 = vmax.f32 %v1152, 0.0
    %v1185 = vmax.f32 %v1153, 0.0
    %v1186 = vmax.f32 %v1154, %v1156
    %v1187 = vmax.f32 %v1155, %v1157
    %v1188 = vmax.f32 %v1186, %v1158
    %v1189 = vmax.f32 %v1187, %v1159
    %v1190 = vmax.f32 %v1188, %v1160
    %v1191 = vmax.f32 %v1189, %v1161
    %v1192 = vmax.f32 %v1190, %v1162
    %v1193 = vmax.f32 %v1191, %v1163
    %v1194 = vmax.f32 %v1192, %v1164
    %v1195 = vmax.f32 %v1193, %v1165
    %v1196 = vmax.f32 %v1194, %v1166
    %v1197 = vmax.f32 %v1195, %v1167
    %v1198 = vmax.f32 %v1196, %v1168
    %v1199 = vmax.f32 %v1197, %v1169
    %v1200 = vmax.f32 %v1198, %v1170
    %v1201 = vmax.f32 %v1199, %v1171
    %v1202 = vmax.f32 %v1200, %v1172
    %v1203 = vmax.f32 %v1201, %v1173
    %v1204 = vmax.f32 %v1202, %v1174
    %v1205 = vmax.f32 %v1203, %v1175
    %v1206 = vmax.f32 %v1204, %v1176
    %v1207 = vmax.f32 %v1205, %v1177
    %v1208 = vmax.f32 %v1206, %v1178
    %v1209 = vmax.f32 %v1207, %v1179
    %v1210 = vld [vmem:[%s3] sm:$0x1]
    %v1211 = vperm.slane %v1210, 0
    %v1212 = vmul.f32 %v1180, %v1211
    %v1213 = vmul.f32 %v1181, %v1211
    %v1214 = vmax.f32 %v1208, %v1212
    %v1215 = vmax.f32 %v1209, %v1213
    %v1216 = vld [vmem:[%s3 + $0x1] sm:$0x1]
    %v1217 = vperm.slane %v1216, 0
    %v1218 = vmul.f32 %v1182, %v1217
    %v1219 = vmul.f32 %v1183, %v1217
    %v1220 = vmax.f32 %v1214, %v1218
    %v1221 = vmax.f32 %v1215, %v1219
    %v1222 = vld [vmem:[%s3 + $0x2] sm:$0x1]
    %v1223 = vperm.slane %v1222, 0
    %v1224 = vmul.f32 %v1184, %v1223
    %v1225 = vmul.f32 %v1185, %v1223
    %v1226 = vmax.f32 %v1220, %v1224
    %v1227 = vmax.f32 %v1221, %v1225
    %1228 = vst [vmem:[#allocation2] sm:$0xff] %v1226
    %1229 = vst [vmem:[#allocation2 + $0x8] sm:$0xff] %v1227
    // Predicated region
    $region18: #{tpu_custom_call.1} parent=1 // pred_check
      _
    $region19: #{tpu_custom_call.1} parent=1 // pred_check_branch
      %1231 = sbr.rel (0) target = $region21
    $region20: #{tpu_custom_call.1} parent=1 // pred_region
      %1233 = vsyncadd [#allocation3], 0
      %s1234 = sshll.u32 [#allocation2], 4
      %s1235 = int_to_ptr.vmem [resolvable:$true] %s1234
      %s1236 = sshll.u32 %s4, 4
      %s1237 = int_to_ptr.hbm [resolvable:$true] %s1236
      %1242 = dma.vmem_to_hbm [thread:$0]  %s1235, 256, %s1237, [#allocation3], 128, 128, 8
    $region21: #{tpu_custom_call.1} parent=1 // pred_fallthru
      _
    // Predicated region
    $region22: #{tpu_custom_call.1} parent=1 // pred_check
      _
    $region23: #{tpu_custom_call.1} parent=1 // pred_check_branch
      %1244 = sbr.rel (0) target = $region25
    $region24: #{tpu_custom_call.1} parent=1 // pred_region
      %1246 = dma.done [#allocation3], 256
    $region25: #{tpu_custom_call.1} parent=1 // pred_fallthru
      _
    %1247 = vsyncpa [#allocation3], 1

</llo_original>
